<compile_context>
chip_gen: v5e
topology: v5e:2x2
jax: 0.10.0
libtpu: 0.0.40
codegen_flags: <defaults>
</compile_context>

<pallas_src>
import jax
import jax.numpy as jnp
from jax.experimental import pallas as pl
from jax.experimental.pallas import tpu as pltpu

# ---- model configuration (small, deterministic) ----------------------------
B             = 8     # batch
D_IN          = 32    # raw data feature dim (input to synthetic data_encoder)
N_LABELS      = 16
LATENT_DIM    = 32    # hidden width of label_encoder MLP
DATA_EMB_DIM  = 64
LABEL_EMB_DIM = 64
N_LAYERS      = 4     # label_encoder depth
EMB_DIM       = DATA_EMB_DIM + LABEL_EMB_DIM   # 128 -> lane-dense
BN_EPS        = 1e-5

PACK   = 128          # lane-dense packing width (vreg lane count)
H_OFF  = D_IN         # lane offset of the label-MLP hidden state in the packed state
TILE_B = B            # batch tile; use >=128 for real batches (<=512 on v7x / 64MiB VMEM)
N_MM   = N_LAYERS + 1 # 3 hidden stages + fused emb stage + prediction head


def mlc_decoder_kernel(inp_ref, w_ref, v_ref, emb_ref, ydist_ref):
    """Fully fused MLCDecoder forward on one lane-dense (TILE_B, 128) state."""
    f32 = jnp.float32
    lane = jax.lax.broadcasted_iota(jnp.int32, (TILE_B, PACK), 1)
    hidden_mask = lane >= H_OFF          # ReLU only on label-MLP hidden lanes (x untouched)
    data_mask = lane < DATA_EMB_DIM      # ReLU only on the data-encoder half of emb

    v = v_ref[...]                       # (8, 128) bias / folded-BN vector slab
    s = inp_ref[...]                     # (TILE_B, 128) packed state: [x | y.float() | 0]

    # label_encoder hidden stages (Dropout is identity in eval mode).
    # x rides through an identity block in each stage weight, so the state
    # stays a single lane-dense vreg and no concatenate is ever needed.
    for i in range(N_LAYERS - 1):
        z = jnp.dot(s, w_ref[i], preferred_element_type=f32) + v[i:i + 1, :]
        s = jnp.where(hidden_mask, jnp.maximum(z, 0.0), z)

    # Fused emb stage: block-diagonal [[wde, 0], [0, w3 * s_y]] produces
    # [x @ wde + bde | (h3 @ w3 + b3) folded through BN] in ONE matmul.
    z = jnp.dot(s, w_ref[N_LAYERS - 1], preferred_element_type=f32) + v[3:4, :]
    z = jnp.where(data_mask, jnp.maximum(z, 0.0), z)      # data_encoder ReLU only
    emb = z * v[4:5, :] + v[5:6, :]                       # BN x-half scale/shift (exact)
    emb_ref[...] = emb

    # Prediction head, lane-padded to 128; wrapper slices [:, :N_LABELS].
    logits = jnp.dot(emb, w_ref[N_LAYERS], preferred_element_type=f32) + v[6:7, :]
    ydist_ref[...] = jax.nn.sigmoid(logits)


def init_params(key):
    """Deterministic synthetic parameters (shapes follow MLCDecoder.__init__)."""
    ks = jax.random.split(key, 16)
    s = 0.05  # small init scale

    def lin(k, din, dout):
        kw, kb = jax.random.split(k)
        return (jax.random.normal(kw, (din, dout), jnp.float32) * s,
                jax.random.normal(kb, (1, dout), jnp.float32) * s)

    p = {}
    # TODO(synk): original data_encoder is an externally supplied nn.Module;
    # a Linear+ReLU stand-in with matching output dim is used here.
    p["wde"], p["bde"] = lin(ks[0], D_IN, DATA_EMB_DIM)
    # label encoder MLP: n_labels -> latent -> latent -> latent -> label_emb
    dims = [N_LABELS] + [LATENT_DIM] * (N_LAYERS - 1) + [LABEL_EMB_DIM]
    for i in range(N_LAYERS):
        p[f"w{i}"], p[f"b{i}"] = lin(ks[1 + i], dims[i], dims[i + 1])
    # prediction layer
    p["wp"], p["bp"] = lin(ks[10], EMB_DIM, N_LABELS)
    # BatchNorm1d parameters / running stats (deterministic, non-trivial)
    p["gamma"] = 1.0 + 0.1 * jax.random.normal(ks[11], (1, EMB_DIM), jnp.float32)
    p["beta"]  = 0.1 * jax.random.normal(ks[12], (1, EMB_DIM), jnp.float32)
    p["rmean"] = 0.1 * jax.random.normal(ks[13], (1, EMB_DIM), jnp.float32)
    p["rvar"]  = 1.0 + 0.1 * jax.random.uniform(ks[14], (1, EMB_DIM), jnp.float32)
    return p


def pack_params(p):
    """Fold eval-mode BatchNorm and pack everything into two lane-dense slabs.

    Returns:
      w_slab: (5, 128, 128) f32 -- the five 128x128 stage weights, stacked.
      v_slab: (8, 128)      f32 -- biases + folded-BN scale/shift vectors.
    """
    f32 = jnp.float32
    # BN eval affine: bn(v) = v * s + t, s = gamma/sqrt(var+eps), t = beta - mean*s
    s = p["gamma"][0] * jax.lax.rsqrt(p["rvar"][0] + BN_EPS)      # (128,)
    t = p["beta"][0] - p["rmean"][0] * s
    s_x, s_y = s[:DATA_EMB_DIM], s[DATA_EMB_DIM:]
    t_x, t_y = t[:DATA_EMB_DIM], t[DATA_EMB_DIM:]

    def place(*blocks):
        W = jnp.zeros((PACK, PACK), f32)
        for r, c, m in blocks:
            W = W.at[r:r + m.shape[0], c:c + m.shape[1]].set(m)
        return W

    eye_x = jnp.eye(D_IN, dtype=f32)   # passes x through the hidden stages
    w_slab = jnp.stack([
        place((0, 0, eye_x), (H_OFF, H_OFF, p["w0"])),                       # stage 0
        place((0, 0, eye_x), (H_OFF, H_OFF, p["w1"])),                       # stage 1
        place((0, 0, eye_x), (H_OFF, H_OFF, p["w2"])),                       # stage 2
        place((0, 0, p["wde"]),                                              # fused emb
              (H_OFF, DATA_EMB_DIM, p["w3"] * s_y[None, :])),                # (BN y-fold)
        place((0, 0, p["wp"])),                                              # pred head
    ], axis=0)                                                               # (5, 128, 128)

    def vrow(*pieces):
        r = jnp.zeros((PACK,), f32)
        for off, vec in pieces:
            r = r.at[off:off + vec.shape[0]].set(vec)
        return r

    v_slab = jnp.stack([
        vrow((H_OFF, p["b0"][0])),                                           # row 0: b0
        vrow((H_OFF, p["b1"][0])),                                           # row 1: b1
        vrow((H_OFF, p["b2"][0])),                                           # row 2: b2
        vrow((0, p["bde"][0]), (DATA_EMB_DIM, p["b3"][0] * s_y + t_y)),      # row 3: fused bias
        vrow((0, s_x), (DATA_EMB_DIM, jnp.ones((LABEL_EMB_DIM,), f32))),     # row 4: BN scale
        vrow((0, t_x)),                                                      # row 5: BN shift
        vrow((0, p["bp"][0])),                                               # row 6: bp (padded)
        jnp.zeros((PACK,), f32),                                             # row 7: pad
    ])                                                                       # (8, 128)
    return w_slab, v_slab


def mlc_decoder_forward(x, y, w_slab, v_slab):
    batch = x.shape[0]
    padded = pl.cdiv(batch, TILE_B) * TILE_B
    # Pack both activations (y cast to f32 like y.float()) into one lane-dense slab.
    inp = jnp.zeros((padded, PACK), jnp.float32)
    inp = inp.at[:batch, :D_IN].set(x)
    inp = inp.at[:batch, D_IN:D_IN + N_LABELS].set(y.astype(jnp.float32))

    emb, ydist = pl.pallas_call(
        mlc_decoder_kernel,
        out_shape=(jax.ShapeDtypeStruct((padded, PACK), jnp.float32),
                   jax.ShapeDtypeStruct((padded, PACK), jnp.float32)),
        grid_spec=pltpu.PrefetchScalarGridSpec(
            num_scalar_prefetch=0,
            grid=(padded // TILE_B,),
            in_specs=[pl.BlockSpec((TILE_B, PACK), lambda i: (i, 0)),       # activations
                      pl.BlockSpec((N_MM, PACK, PACK), lambda i: (0, 0, 0)),# weight slab
                      pl.BlockSpec((8, PACK), lambda i: (0, 0))],           # bias/BN slab
            out_specs=(pl.BlockSpec((TILE_B, PACK), lambda i: (i, 0)),
                       pl.BlockSpec((TILE_B, PACK), lambda i: (i, 0)))),
        compiler_params=pltpu.CompilerParams(
            dimension_semantics=("parallel",)),   # shards batch tiles across v7x's 2 TCs
    )(inp, w_slab, v_slab)
    return {"embedding": emb[:batch], "y_dist": ydist[:batch, :N_LABELS]}


def reference_forward(x, y, p):
    """Pure-JAX, unfused/unfolded reference of the original module (eval mode)."""
    hp = jax.lax.Precision.HIGHEST
    dot = lambda a, b: jnp.dot(a, b, precision=hp)
    x_emb = jnp.maximum(dot(x, p["wde"]) + p["bde"], 0.0)
    h = y.astype(jnp.float32)
    h = jnp.maximum(dot(h, p["w0"]) + p["b0"], 0.0)
    h = jnp.maximum(dot(h, p["w1"]) + p["b1"], 0.0)
    h = jnp.maximum(dot(h, p["w2"]) + p["b2"], 0.0)
    y_emb = dot(h, p["w3"]) + p["b3"]
    emb = jnp.concatenate([x_emb, y_emb], axis=-1)
    emb = (emb - p["rmean"]) * jax.lax.rsqrt(p["rvar"] + BN_EPS) * p["gamma"] + p["beta"]
    y_dist = jax.nn.sigmoid(dot(emb, p["wp"]) + p["bp"])
    return emb, y_dist


if __name__ == "__main__":
    key = jax.random.PRNGKey(0)
    k_param, k_x, k_y = jax.random.split(key, 3)

    params = init_params(k_param)
    x = jax.random.normal(k_x, (B, D_IN), jnp.float32)
    # multi-hot label matrix (int; cast to float like y.float() in the module)
    y = (jax.random.uniform(k_y, (B, N_LABELS)) > 0.5).astype(jnp.int32)

    w_slab, v_slab = pack_params(params)
    out = mlc_decoder_forward(x, y, w_slab, v_slab)
    jax.block_until_ready(out)

    emb, y_dist = out["embedding"], out["y_dist"]
    assert emb.shape == (B, EMB_DIM) and y_dist.shape == (B, N_LABELS)
    assert bool(jnp.all(jnp.isfinite(emb))) and bool(jnp.all(jnp.isfinite(y_dist)))
    assert bool(jnp.all((y_dist >= 0.0) & (y_dist <= 1.0)))

    # numerical check against the unfused reference; the BN fold / block-diag
    # fusion is algebraically exact, residual error is only MXU f32 rounding.
    ref_emb, ref_ydist = reference_forward(x, y, params)
    assert bool(jnp.allclose(emb, ref_emb, rtol=1e-2, atol=1e-2))
    assert bool(jnp.allclose(y_dist, ref_ydist, rtol=1e-2, atol=1e-2))

    print("KERNEL_OK")
</pallas_src>

<mosaic_0001>
module attributes {stable_mosaic.version = 11 : i64} {
  func.func @mlc_decoder_kernel(%arg0: i32, %arg1: memref<8x128xf32, #tpu.memory_space<vmem>>, %arg2: memref<5x128x128xf32, #tpu.memory_space<vmem>>, %arg3: memref<8x128xf32, #tpu.memory_space<vmem>>, %arg4: memref<8x128xf32, #tpu.memory_space<vmem>>, %arg5: memref<8x128xf32, #tpu.memory_space<vmem>>) attributes {dimension_semantics = [#tpu.dimension_semantics<parallel>], iteration_bounds = array<i64: 1>, scalar_prefetch = 0 : i64, scratch_operands = 0 : i64, tpu.core_type = #tpu.core_type<tc>, window_params = [{transform_indices = @transform_0, window_bounds = array<i64: 8, 128>}, {pipeline_mode = #tpu.pipeline_mode<synchronous>, transform_indices = @transform_1, window_bounds = array<i64: 5, 128, 128>}, {pipeline_mode = #tpu.pipeline_mode<synchronous>, transform_indices = @transform_2, window_bounds = array<i64: 8, 128>}, {transform_indices = @transform_3, window_bounds = array<i64: 8, 128>}, {transform_indices = @transform_4, window_bounds = array<i64: 8, 128>}]} {
    %0 = tpu.iota {dimensions = array<i32: 1>} : vector<8x128xi32>
    %c32_i32 = arith.constant 32 : i32
    %1 = vector.broadcast %c32_i32 : i32 to vector<8x128xi32>
    %2 = arith.cmpi sge, %0, %1 : vector<8x128xi32>
    %c64_i32 = arith.constant 64 : i32
    %3 = vector.broadcast %c64_i32 : i32 to vector<8x128xi32>
    %4 = arith.cmpi slt, %0, %3 : vector<8x128xi32>
    %c0 = arith.constant 0 : index
    %c0_0 = arith.constant 0 : index
    %5 = vector.load %arg3[%c0, %c0_0] : memref<8x128xf32, #tpu.memory_space<vmem>>, vector<8x128xf32>
    %c0_1 = arith.constant 0 : index
    %c0_2 = arith.constant 0 : index
    %6 = vector.load %arg1[%c0_1, %c0_2] : memref<8x128xf32, #tpu.memory_space<vmem>>, vector<8x128xf32>
    %c0_3 = arith.constant 0 : index
    %c0_4 = arith.constant 0 : index
    %c0_5 = arith.constant 0 : index
    %7 = vector.load %arg2[%c0_3, %c0_4, %c0_5] : memref<5x128x128xf32, #tpu.memory_space<vmem>>, vector<1x128x128xf32>
    %8 = vector.shape_cast %7 : vector<1x128x128xf32> to vector<128x128xf32>
    %cst = arith.constant dense<0.000000e+00> : vector<8x128xf32>
    %9 = tpu.matmul %6, %8, %cst {dimension_numbers = #tpu.dot_dimension_numbers<[1], [0], [0], [1], [0, 0, 1, 1], [], []>} : vector<8x128xf32>, vector<128x128xf32>, vector<8x128xf32> -> vector<8x128xf32>
    %10 = vector.extract_strided_slice %5 {offsets = [0, 0], sizes = [1, 128], strides = [1, 1]} : vector<8x128xf32> to vector<1x128xf32>
    %11 = vector.broadcast %10 : vector<1x128xf32> to vector<8x128xf32>
    %12 = arith.addf %9, %11 : vector<8x128xf32>
    %cst_6 = arith.constant 0.000000e+00 : f32
    %13 = vector.broadcast %cst_6 : f32 to vector<8x128xf32>
    %14 = arith.maximumf %12, %13 : vector<8x128xf32>
    %15 = arith.select %2, %14, %12 : vector<8x128xi1>, vector<8x128xf32>
    %c1 = arith.constant 1 : index
    %c0_7 = arith.constant 0 : index
    %c0_8 = arith.constant 0 : index
    %16 = vector.load %arg2[%c1, %c0_7, %c0_8] : memref<5x128x128xf32, #tpu.memory_space<vmem>>, vector<1x128x128xf32>
    %17 = vector.shape_cast %16 : vector<1x128x128xf32> to vector<128x128xf32>
    %cst_9 = arith.constant dense<0.000000e+00> : vector<8x128xf32>
    %18 = tpu.matmul %15, %17, %cst_9 {dimension_numbers = #tpu.dot_dimension_numbers<[1], [0], [0], [1], [0, 0, 1, 1], [], []>} : vector<8x128xf32>, vector<128x128xf32>, vector<8x128xf32> -> vector<8x128xf32>
    %19 = vector.extract_strided_slice %5 {offsets = [1, 0], sizes = [1, 128], strides = [1, 1]} : vector<8x128xf32> to vector<1x128xf32>
    %20 = vector.broadcast %19 : vector<1x128xf32> to vector<8x128xf32>
    %21 = arith.addf %18, %20 : vector<8x128xf32>
    %cst_10 = arith.constant 0.000000e+00 : f32
    %22 = vector.broadcast %cst_10 : f32 to vector<8x128xf32>
    %23 = arith.maximumf %21, %22 : vector<8x128xf32>
    %24 = arith.select %2, %23, %21 : vector<8x128xi1>, vector<8x128xf32>
    %c2 = arith.constant 2 : index
    %c0_11 = arith.constant 0 : index
    %c0_12 = arith.constant 0 : index
    %25 = vector.load %arg2[%c2, %c0_11, %c0_12] : memref<5x128x128xf32, #tpu.memory_space<vmem>>, vector<1x128x128xf32>
    %26 = vector.shape_cast %25 : vector<1x128x128xf32> to vector<128x128xf32>
    %cst_13 = arith.constant dense<0.000000e+00> : vector<8x128xf32>
    %27 = tpu.matmul %24, %26, %cst_13 {dimension_numbers = #tpu.dot_dimension_numbers<[1], [0], [0], [1], [0, 0, 1, 1], [], []>} : vector<8x128xf32>, vector<128x128xf32>, vector<8x128xf32> -> vector<8x128xf32>
    %28 = vector.extract_strided_slice %5 {offsets = [2, 0], sizes = [1, 128], strides = [1, 1]} : vector<8x128xf32> to vector<1x128xf32>
    %29 = vector.broadcast %28 : vector<1x128xf32> to vector<8x128xf32>
    %30 = arith.addf %27, %29 : vector<8x128xf32>
    %cst_14 = arith.constant 0.000000e+00 : f32
    %31 = vector.broadcast %cst_14 : f32 to vector<8x128xf32>
    %32 = arith.maximumf %30, %31 : vector<8x128xf32>
    %33 = arith.select %2, %32, %30 : vector<8x128xi1>, vector<8x128xf32>
    %c3 = arith.constant 3 : index
    %c0_15 = arith.constant 0 : index
    %c0_16 = arith.constant 0 : index
    %34 = vector.load %arg2[%c3, %c0_15, %c0_16] : memref<5x128x128xf32, #tpu.memory_space<vmem>>, vector<1x128x128xf32>
    %35 = vector.shape_cast %34 : vector<1x128x128xf32> to vector<128x128xf32>
    %cst_17 = arith.constant dense<0.000000e+00> : vector<8x128xf32>
    %36 = tpu.matmul %33, %35, %cst_17 {dimension_numbers = #tpu.dot_dimension_numbers<[1], [0], [0], [1], [0, 0, 1, 1], [], []>} : vector<8x128xf32>, vector<128x128xf32>, vector<8x128xf32> -> vector<8x128xf32>
    %37 = vector.extract_strided_slice %5 {offsets = [3, 0], sizes = [1, 128], strides = [1, 1]} : vector<8x128xf32> to vector<1x128xf32>
    %38 = vector.broadcast %37 : vector<1x128xf32> to vector<8x128xf32>
    %39 = arith.addf %36, %38 : vector<8x128xf32>
    %cst_18 = arith.constant 0.000000e+00 : f32
    %40 = vector.broadcast %cst_18 : f32 to vector<8x128xf32>
    %41 = arith.maximumf %39, %40 : vector<8x128xf32>
    %42 = arith.select %4, %41, %39 : vector<8x128xi1>, vector<8x128xf32>
    %43 = vector.extract_strided_slice %5 {offsets = [4, 0], sizes = [1, 128], strides = [1, 1]} : vector<8x128xf32> to vector<1x128xf32>
    %44 = vector.broadcast %43 : vector<1x128xf32> to vector<8x128xf32>
    %45 = arith.mulf %42, %44 : vector<8x128xf32>
    %46 = vector.extract_strided_slice %5 {offsets = [5, 0], sizes = [1, 128], strides = [1, 1]} : vector<8x128xf32> to vector<1x128xf32>
    %47 = vector.broadcast %46 : vector<1x128xf32> to vector<8x128xf32>
    %48 = arith.addf %45, %47 : vector<8x128xf32>
    %c0_19 = arith.constant 0 : index
    %c0_20 = arith.constant 0 : index
    %49 = vector.load %arg4[%c0_19, %c0_20] : memref<8x128xf32, #tpu.memory_space<vmem>>, vector<8x128xf32>
    tpu.vector_store %arg4[%c0_19, %c0_20], %48 {strides = array<i32>} : memref<8x128xf32, #tpu.memory_space<vmem>>, vector<8x128xf32>,
    %c4 = arith.constant 4 : index
    %c0_21 = arith.constant 0 : index
    %c0_22 = arith.constant 0 : index
    %50 = vector.load %arg2[%c4, %c0_21, %c0_22] : memref<5x128x128xf32, #tpu.memory_space<vmem>>, vector<1x128x128xf32>
    %51 = vector.shape_cast %50 : vector<1x128x128xf32> to vector<128x128xf32>
    %cst_23 = arith.constant dense<0.000000e+00> : vector<8x128xf32>
    %52 = tpu.matmul %48, %51, %cst_23 {dimension_numbers = #tpu.dot_dimension_numbers<[1], [0], [0], [1], [0, 0, 1, 1], [], []>} : vector<8x128xf32>, vector<128x128xf32>, vector<8x128xf32> -> vector<8x128xf32>
    %53 = vector.extract_strided_slice %5 {offsets = [6, 0], sizes = [1, 128], strides = [1, 1]} : vector<8x128xf32> to vector<1x128xf32>
    %54 = vector.broadcast %53 : vector<1x128xf32> to vector<8x128xf32>
    %55 = arith.addf %52, %54 : vector<8x128xf32>
    %56 = arith.negf %55 : vector<8x128xf32>
    %57 = math.exp %56 : vector<8x128xf32>
    %cst_24 = arith.constant 1.000000e+00 : f32
    %58 = vector.broadcast %cst_24 : f32 to vector<8x128xf32>
    %59 = arith.addf %58, %57 : vector<8x128xf32>
    %60 = arith.divf %58, %59 : vector<8x128xf32>
    %c0_25 = arith.constant 0 : index
    %c0_26 = arith.constant 0 : index
    %61 = vector.load %arg5[%c0_25, %c0_26] : memref<8x128xf32, #tpu.memory_space<vmem>>, vector<8x128xf32>
    tpu.vector_store %arg5[%c0_25, %c0_26], %60 {strides = array<i32>} : memref<8x128xf32, #tpu.memory_space<vmem>>, vector<8x128xf32>,
    return
  }
  func.func @transform_0(%arg0: i32) -> (i32, i32) {
    %c0_i32 = arith.constant 0 : i32
    %c0_i32_0 = arith.constant 0 : i32
    return %arg0, %c0_i32 : i32, i32
  }
  func.func @transform_1(%arg0: i32) -> (i32, i32, i32) {
    %c0_i32 = arith.constant 0 : i32
    %c0_i32_0 = arith.constant 0 : i32
    %c0_i32_1 = arith.constant 0 : i32
    %c0_i32_2 = arith.constant 0 : i32
    return %c0_i32, %c0_i32_0, %c0_i32_1 : i32, i32, i32
  }
  func.func @transform_2(%arg0: i32) -> (i32, i32) {
    %c0_i32 = arith.constant 0 : i32
    %c0_i32_0 = arith.constant 0 : i32
    %c0_i32_1 = arith.constant 0 : i32
    return %c0_i32, %c0_i32_0 : i32, i32
  }
  func.func @transform_3(%arg0: i32) -> (i32, i32) {
    %c0_i32 = arith.constant 0 : i32
    %c0_i32_0 = arith.constant 0 : i32
    return %arg0, %c0_i32 : i32, i32
  }
  func.func @transform_4(%arg0: i32) -> (i32, i32) {
    %c0_i32 = arith.constant 0 : i32
    %c0_i32_0 = arith.constant 0 : i32
    return %arg0, %c0_i32 : i32, i32
  }
}

</mosaic_0001>

<llo_original>
// kernel: tpu_custom_call.1
$region0: #{tpu_custom_call.1}
  #allocation0 [shape = 'u32[]', space=smem, size = 0x4, offset = 0x4, fixed_abs, tag = 'smem constant byte address 0x4 - core index']
  #allocation1 [shape = 'u32[72,128]{1,0:T(1,128)}', space=vmem, size = 0x9000, scoped, tag = 'internal scratch']
  %s0 = inlined_call_operand.hbm [shape: f32[8,128], index: 0, kind: input, shape index: {}]
  %s1 = inlined_call_operand.hbm [shape: f32[5,128,128], index: 1, kind: input, shape index: {}]
  %s2 = inlined_call_operand.hbm [shape: f32[8,128], index: 2, kind: input, shape index: {}]
  %s3 = inlined_call_operand.hbm [shape: f32[8,128], index: 3, kind: output, shape index: {0}]
  %s4 = inlined_call_operand.hbm [shape: f32[8,128], index: 4, kind: output, shape index: {1}]
  %5 = xla_tuple %s3, %s4
  %s6 = sld [smem:[#allocation0]]
  $region42: #{tpu_custom_call.1} parent=0
    _
  %s8 = ssub.s32 1, %s6
  %s9 = scalar_select 0, %s8, %s6
  $region1: #{tpu_custom_call.1} parent=0
    #allocation2 [shape = 'u8[4096]{0}', space=vmem, size = 0x1000, scoped, tag = 'input window, operand 0, single buffered']
    #allocation3 [shape = 's32[1]{0}', space=sflag, size = 0x4, scoped, tag = 'scoped memory for tpu_custom_call.1']
    #allocation4 [shape = 's32[1]{0}', space=sflag, size = 0x4, scoped, tag = 'scoped memory for tpu_custom_call.1']
    #allocation5 [shape = 'u8[327680]{0}', space=vmem, size = 0x50000, scoped, tag = 'input window, operand 1, single buffered']
    #allocation6 [shape = 's32[1]{0}', space=sflag, size = 0x4, scoped, tag = 'scoped memory for tpu_custom_call.1']
    #allocation7 [shape = 'u8[4096]{0}', space=vmem, size = 0x1000, scoped, tag = 'input window, operand 2, single buffered']
    #allocation8 [shape = 'u8[4096]{0}', space=vmem, size = 0x1000, scoped, tag = 'output window, operand 0, single buffered']
    #allocation9 [shape = 'u8[4096]{0}', space=vmem, size = 0x1000, scoped, tag = 'output window, operand 1, single buffered']
    #allocation10 [shape = 's32[1]{0}', space=sflag, size = 0x4, scoped, tag = 'scoped memory for tpu_custom_call.1']
    %10 = vsyncpa [#allocation3], 0
    %11 = vsyncpa [#allocation6], 0
    %12 = vsyncpa [#allocation4], 0
    %13 = vsyncpa [#allocation10], 0
    // Predicated region
    $region2: #{tpu_custom_call.1} parent=1 // pred_check
      _
    $region3: #{tpu_custom_call.1} parent=1 // pred_check_branch
      %15 = sbr.rel (0) target = $region5
    $region4: #{tpu_custom_call.1} parent=1 // pred_region
      %17 = vsyncadd [#allocation3], 0
      %s19 = sshll.u32 %s0, 4
      %s20 = int_to_ptr.hbm [resolvable:$true] %s19
      %s21 = sshll.u32 [#allocation2], 4
      %s22 = int_to_ptr.vmem [resolvable:$true] %s21
      %24 = dma.hbm_to_vmem [thread:$0]  %s20, 128, %s22, [#allocation3]
    $region5: #{tpu_custom_call.1} parent=1 // pred_fallthru
      _
    // Predicated region
    $region6: #{tpu_custom_call.1} parent=1 // pred_check
      _
    $region7: #{tpu_custom_call.1} parent=1 // pred_check_branch
      %26 = sbr.rel (0) target = $region9
    $region8: #{tpu_custom_call.1} parent=1 // pred_region
      %28 = vsyncadd [#allocation6], 0
      %s29 = sshll.u32 %s1, 4
      %s30 = int_to_ptr.hbm [resolvable:$true] %s29
      %s31 = sshll.u32 [#allocation5], 4
      %s32 = int_to_ptr.vmem [resolvable:$true] %s31
      %37 = dma.hbm_to_vmem [thread:$0]  %s30, 10240, %s32, [#allocation6], 128, 128, 8
    $region9: #{tpu_custom_call.1} parent=1 // pred_fallthru
      _
    // Predicated region
    $region10: #{tpu_custom_call.1} parent=1 // pred_check
      _
    $region11: #{tpu_custom_call.1} parent=1 // pred_check_branch
      %39 = sbr.rel (0) target = $region13
    $region12: #{tpu_custom_call.1} parent=1 // pred_region
      %41 = vsyncadd [#allocation6], 0
      %s43 = sshll.u32 %s2, 4
      %s44 = int_to_ptr.hbm [resolvable:$true] %s43
      %s45 = sshll.u32 [#allocation7], 4
      %s46 = int_to_ptr.vmem [resolvable:$true] %s45
      %48 = dma.hbm_to_vmem [thread:$0]  %s44, 128, %s46, [#allocation6]
    $region13: #{tpu_custom_call.1} parent=1 // pred_fallthru
      _
    // Predicated region
    $region14: #{tpu_custom_call.1} parent=1 // pred_check
      _
    $region15: #{tpu_custom_call.1} parent=1 // pred_check_branch
      %50 = sbr.rel (0) target = $region17
    $region16: #{tpu_custom_call.1} parent=1 // pred_region
      %52 = dma.done [#allocation3], 128
    $region17: #{tpu_custom_call.1} parent=1 // pred_fallthru
      _
    // Predicated region
    $region18: #{tpu_custom_call.1} parent=1 // pred_check
      _
    $region19: #{tpu_custom_call.1} parent=1 // pred_check_branch
      %54 = sbr.rel (0) target = $region21
    $region20: #{tpu_custom_call.1} parent=1 // pred_region
      %56 = dma.done [#allocation6], 10240
    $region21: #{tpu_custom_call.1} parent=1 // pred_fallthru
      _
    // Predicated region
    $region22: #{tpu_custom_call.1} parent=1 // pred_check
      _
    $region23: #{tpu_custom_call.1} parent=1 // pred_check_branch
      %58 = sbr.rel (0) target = $region25
    $region24: #{tpu_custom_call.1} parent=1 // pred_region
      %60 = dma.done [#allocation6], 128
    $region25: #{tpu_custom_call.1} parent=1 // pred_fallthru
      _
    %v61 = vlaneseq
    %v62 = vand.u32 %v61, 127
    %vm63 = vcmp.ge.s32.totalorder %v62, 32
    %vm64 = vcmp.lt.s32.totalorder %v62, 64
    %v65 = vld [vmem:[#allocation7] sm:$0xff]
    %v66 = vld [vmem:[#allocation2] sm:$0xff]
    %v67 = vld [vmem:[#allocation5] sm:$0xff]
    %v68 = vld [vmem:[#allocation5 + $0x8] sm:$0xff]
    %v69 = vld [vmem:[#allocation5 + $0x10] sm:$0xff]
    %v70 = vld [vmem:[#allocation5 + $0x18] sm:$0xff]
    %v71 = vld [vmem:[#allocation5 + $0x20] sm:$0xff]
    %v72 = vld [vmem:[#allocation5 + $0x28] sm:$0xff]
    %v73 = vld [vmem:[#allocation5 + $0x30] sm:$0xff]
    %v74 = vld [vmem:[#allocation5 + $0x38] sm:$0xff]
    %v75 = vld [vmem:[#allocation5 + $0x40] sm:$0xff]
    %v76 = vld [vmem:[#allocation5 + $0x48] sm:$0xff]
    %v77 = vld [vmem:[#allocation5 + $0x50] sm:$0xff]
    %v78 = vld [vmem:[#allocation5 + $0x58] sm:$0xff]
    %v79 = vld [vmem:[#allocation5 + $0x60] sm:$0xff]
    %v80 = vld [vmem:[#allocation5 + $0x68] sm:$0xff]
    %v81 = vld [vmem:[#allocation5 + $0x70] sm:$0xff]
    %v82 = vld [vmem:[#allocation5 + $0x78] sm:$0xff]
    %v83 = vperm.slane %v65, 0
    %84 = vmatpush.msra.mxu0 %v82
    %85 = vmatpush.msra.mxu0 %v81
    %86 = vmatpush.msra.mxu0 %v80
    %87 = vmatpush.msra.mxu0 %v79
    %88 = vmatpush.msra.mxu0 %v78
    %89 = vmatpush.msra.mxu0 %v77
    %90 = vmatpush.msra.mxu0 %v76
    %91 = vmatpush.msra.mxu0 %v75
    %92 = vmatpush.msra.mxu0 %v74
    %93 = vmatpush.msra.mxu0 %v73
    %94 = vmatpush.msra.mxu0 %v72
    %95 = vmatpush.msra.mxu0 %v71
    %96 = vmatpush.msra.mxu0 %v70
    %97 = vmatpush.msra.mxu0 %v69
    %98 = vmatpush.msra.mxu0 %v68
    %99 = vmatpush.msra.mxu0 %v67
    %100 = vmatmul.f32.gmra.mxu0 %v66
    %v101 = vpop.f32.mrf.mxu0
    %v102 = vadd.f32 %v83, %v101
    %103 = vdwg.mxu0
    %v104 = vmax.f32 %v102, 0.0
    %v105 = vsel %vm63, %v104, %v102
    %s106 = scalar_lea.vmem [#allocation5], 128
    %v107 = vld [vmem:[%s106] sm:$0xff]
    %v108 = vld [vmem:[%s106 + $0x8] sm:$0xff]
    %v109 = vld [vmem:[%s106 + $0x10] sm:$0xff]
    %v110 = vld [vmem:[%s106 + $0x18] sm:$0xff]
    %v111 = vld [vmem:[%s106 + $0x20] sm:$0xff]
    %v112 = vld [vmem:[%s106 + $0x28] sm:$0xff]
    %v113 = vld [vmem:[%s106 + $0x30] sm:$0xff]
    %v114 = vld [vmem:[%s106 + $0x38] sm:$0xff]
    %v115 = vld [vmem:[%s106 + $0x40] sm:$0xff]
    %v116 = vld [vmem:[%s106 + $0x48] sm:$0xff]
    %v117 = vld [vmem:[%s106 + $0x50] sm:$0xff]
    %v118 = vld [vmem:[%s106 + $0x58] sm:$0xff]
    %v119 = vld [vmem:[%s106 + $0x60] sm:$0xff]
    %v120 = vld [vmem:[%s106 + $0x68] sm:$0xff]
    %v121 = vld [vmem:[%s106 + $0x70] sm:$0xff]
    %v122 = vld [vmem:[%s106 + $0x78] sm:$0xff]
    %v123 = vperm.slane %v65, 1
    %124 = vmatpush.msra.mxu0 %v122
    %125 = vmatpush.msra.mxu0 %v121
    %126 = vmatpush.msra.mxu0 %v120
    %127 = vmatpush.msra.mxu0 %v119
    %128 = vmatpush.msra.mxu0 %v118
    %129 = vmatpush.msra.mxu0 %v117
    %130 = vmatpush.msra.mxu0 %v116
    %131 = vmatpush.msra.mxu0 %v115
    %132 = vmatpush.msra.mxu0 %v114
    %133 = vmatpush.msra.mxu0 %v113
    %134 = vmatpush.msra.mxu0 %v112
    %135 = vmatpush.msra.mxu0 %v111
    %136 = vmatpush.msra.mxu0 %v110
    %137 = vmatpush.msra.mxu0 %v109
    %138 = vmatpush.msra.mxu0 %v108
    %139 = vmatpush.msra.mxu0 %v107
    %140 = vmatmul.f32.gmra.mxu0 %v105
    %v141 = vpop.f32.mrf.mxu0
    %v142 = vadd.f32 %v123, %v141
    %143 = vdwg.mxu0
    %v144 = vmax.f32 %v142, 0.0
    %v145 = vsel %vm63, %v144, %v142
    %s146 = scalar_lea.vmem [#allocation5], 256
    %v147 = vld [vmem:[%s146] sm:$0xff]
    %v148 = vld [vmem:[%s146 + $0x8] sm:$0xff]
    %v149 = vld [vmem:[%s146 + $0x10] sm:$0xff]
    %v150 = vld [vmem:[%s146 + $0x18] sm:$0xff]
    %v151 = vld [vmem:[%s146 + $0x20] sm:$0xff]
    %v152 = vld [vmem:[%s146 + $0x28] sm:$0xff]
    %v153 = vld [vmem:[%s146 + $0x30] sm:$0xff]
    %v154 = vld [vmem:[%s146 + $0x38] sm:$0xff]
    %v155 = vld [vmem:[%s146 + $0x40] sm:$0xff]
    %v156 = vld [vmem:[%s146 + $0x48] sm:$0xff]
    %v157 = vld [vmem:[%s146 + $0x50] sm:$0xff]
    %v158 = vld [vmem:[%s146 + $0x58] sm:$0xff]
    %v159 = vld [vmem:[%s146 + $0x60] sm:$0xff]
    %v160 = vld [vmem:[%s146 + $0x68] sm:$0xff]
    %v161 = vld [vmem:[%s146 + $0x70] sm:$0xff]
    %v162 = vld [vmem:[%s146 + $0x78] sm:$0xff]
    %v163 = vperm.slane %v65, 2
    %164 = vmatpush.msra.mxu0 %v162
    %165 = vmatpush.msra.mxu0 %v161
    %166 = vmatpush.msra.mxu0 %v160
    %167 = vmatpush.msra.mxu0 %v159
    %168 = vmatpush.msra.mxu0 %v158
    %169 = vmatpush.msra.mxu0 %v157
    %170 = vmatpush.msra.mxu0 %v156
    %171 = vmatpush.msra.mxu0 %v155
    %172 = vmatpush.msra.mxu0 %v154
    %173 = vmatpush.msra.mxu0 %v153
    %174 = vmatpush.msra.mxu0 %v152
    %175 = vmatpush.msra.mxu0 %v151
    %176 = vmatpush.msra.mxu0 %v150
    %177 = vmatpush.msra.mxu0 %v149
    %178 = vmatpush.msra.mxu0 %v148
    %179 = vmatpush.msra.mxu0 %v147
    %180 = vmatmul.f32.gmra.mxu0 %v145
    %v181 = vpop.f32.mrf.mxu0
    %v182 = vadd.f32 %v163, %v181
    %183 = vdwg.mxu0
    %v184 = vmax.f32 %v182, 0.0
    %v185 = vsel %vm63, %v184, %v182
    %s186 = scalar_lea.vmem [#allocation5], 384
    %v187 = vld [vmem:[%s186] sm:$0xff]
    %v188 = vld [vmem:[%s186 + $0x8] sm:$0xff]
    %v189 = vld [vmem:[%s186 + $0x10] sm:$0xff]
    %v190 = vld [vmem:[%s186 + $0x18] sm:$0xff]
    %v191 = vld [vmem:[%s186 + $0x20] sm:$0xff]
    %v192 = vld [vmem:[%s186 + $0x28] sm:$0xff]
    %v193 = vld [vmem:[%s186 + $0x30] sm:$0xff]
    %v194 = vld [vmem:[%s186 + $0x38] sm:$0xff]
    %v195 = vld [vmem:[%s186 + $0x40] sm:$0xff]
    %v196 = vld [vmem:[%s186 + $0x48] sm:$0xff]
    %v197 = vld [vmem:[%s186 + $0x50] sm:$0xff]
    %v198 = vld [vmem:[%s186 + $0x58] sm:$0xff]
    %v199 = vld [vmem:[%s186 + $0x60] sm:$0xff]
    %v200 = vld [vmem:[%s186 + $0x68] sm:$0xff]
    %v201 = vld [vmem:[%s186 + $0x70] sm:$0xff]
    %v202 = vld [vmem:[%s186 + $0x78] sm:$0xff]
    %v203 = vperm.slane %v65, 3
    %204 = vmatpush.msra.mxu0 %v202
    %205 = vmatpush.msra.mxu0 %v201
    %206 = vmatpush.msra.mxu0 %v200
    %207 = vmatpush.msra.mxu0 %v199
    %208 = vmatpush.msra.mxu0 %v198
    %209 = vmatpush.msra.mxu0 %v197
    %210 = vmatpush.msra.mxu0 %v196
    %211 = vmatpush.msra.mxu0 %v195
    %212 = vmatpush.msra.mxu0 %v194
    %213 = vmatpush.msra.mxu0 %v193
    %214 = vmatpush.msra.mxu0 %v192
    %215 = vmatpush.msra.mxu0 %v191
    %216 = vmatpush.msra.mxu0 %v190
    %217 = vmatpush.msra.mxu0 %v189
    %218 = vmatpush.msra.mxu0 %v188
    %219 = vmatpush.msra.mxu0 %v187
    %220 = vmatmul.f32.gmra.mxu0 %v185
    %v221 = vpop.f32.mrf.mxu0
    %v222 = vadd.f32 %v203, %v221
    %223 = vdwg.mxu0
    %v224 = vmax.f32 %v222, 0.0
    %v225 = vsel %vm64, %v224, %v222
    %v226 = vperm.slane %v65, 4
    %v227 = vmul.f32 %v225, %v226
    %v228 = vperm.slane %v65, 5
    %v229 = vadd.f32 %v227, %v228
    %230 = vst [vmem:[#allocation8] sm:$0xff] %v229
    %s231 = scalar_lea.vmem [#allocation5], 512
    %v232 = vld [vmem:[%s231] sm:$0xff]
    %v233 = vld [vmem:[%s231 + $0x8] sm:$0xff]
    %v234 = vld [vmem:[%s231 + $0x10] sm:$0xff]
    %v235 = vld [vmem:[%s231 + $0x18] sm:$0xff]
    %v236 = vld [vmem:[%s231 + $0x20] sm:$0xff]
    %v237 = vld [vmem:[%s231 + $0x28] sm:$0xff]
    %v238 = vld [vmem:[%s231 + $0x30] sm:$0xff]
    %v239 = vld [vmem:[%s231 + $0x38] sm:$0xff]
    %v240 = vld [vmem:[%s231 + $0x40] sm:$0xff]
    %v241 = vld [vmem:[%s231 + $0x48] sm:$0xff]
    %v242 = vld [vmem:[%s231 + $0x50] sm:$0xff]
    %v243 = vld [vmem:[%s231 + $0x58] sm:$0xff]
    %v244 = vld [vmem:[%s231 + $0x60] sm:$0xff]
    %v245 = vld [vmem:[%s231 + $0x68] sm:$0xff]
    %v246 = vld [vmem:[%s231 + $0x70] sm:$0xff]
    %v247 = vld [vmem:[%s231 + $0x78] sm:$0xff]
    %v248 = vperm.slane %v65, 6
    %249 = vmatpush.msra.mxu0 %v247
    %250 = vmatpush.msra.mxu0 %v246
    %251 = vmatpush.msra.mxu0 %v245
    %252 = vmatpush.msra.mxu0 %v244
    %253 = vmatpush.msra.mxu0 %v243
    %254 = vmatpush.msra.mxu0 %v242
    %255 = vmatpush.msra.mxu0 %v241
    %256 = vmatpush.msra.mxu0 %v240
    %257 = vmatpush.msra.mxu0 %v239
    %258 = vmatpush.msra.mxu0 %v238
    %259 = vmatpush.msra.mxu0 %v237
    %260 = vmatpush.msra.mxu0 %v236
    %261 = vmatpush.msra.mxu0 %v235
    %262 = vmatpush.msra.mxu0 %v234
    %263 = vmatpush.msra.mxu0 %v233
    %264 = vmatpush.msra.mxu0 %v232
    %265 = vmatmul.f32.gmra.mxu0 %v229
    %v266 = vpop.f32.mrf.mxu0
    %v267 = vadd.f32 %v248, %v266
    %268 = vdwg.mxu0
    %v269 = vxor.u32 %v267, 2147483648
    %v270 = vmul.f32 %v269, 1.442695
    %v271 = vpow.pop %v270
    %v272 = vadd.f32 %v271, 1.0
    %v273 = vrcp.pop %v272
    %v274 = vmul.f32 %v272, %v273
    %v275 = vsub.f32 1.0, %v274
    %v276 = vmul.f32 %v273, %v275
    %v277 = vadd.f32 %v273, %v276
    %vm278 = vweird.f32 %v272
    %vm279 = vweird.f32 %v273
    %vm280 = vmor %vm278, %vm279
    %v281 = vsel %vm280, %v273, %v277
    %v282 = vand.u32 2147483647, %v272
    %vm283 = vcmp.eq.f32.partialorder %v282, 8.507059e+37
    %v284 = vand.u32 %v272, 2147483648
    %v285 = vor.u32 1.1754944e-38, %v284
    %v286 = vsel %vm283, %v285, %v281
    %v287 = vmul.f32 1.0, %v286
    %288 = vst [vmem:[#allocation9] sm:$0xff] %v287
    // Predicated region
    $region26: #{tpu_custom_call.1} parent=1 // pred_check
      _
    $region27: #{tpu_custom_call.1} parent=1 // pred_check_branch
      %290 = sbr.rel (0) target = $region29
    $region28: #{tpu_custom_call.1} parent=1 // pred_region
      %292 = vsyncadd [#allocation4], 0
      %s294 = sshll.u32 [#allocation8], 4
      %s295 = int_to_ptr.vmem [resolvable:$true] %s294
      %s296 = sshll.u32 %s3, 4
      %s297 = int_to_ptr.hbm [resolvable:$true] %s296
      %299 = dma.vmem_to_hbm [thread:$0]  %s295, 128, %s297, [#allocation4]
    $region29: #{tpu_custom_call.1} parent=1 // pred_fallthru
      _
    // Predicated region
    $region30: #{tpu_custom_call.1} parent=1 // pred_check
      _
    $region31: #{tpu_custom_call.1} parent=1 // pred_check_branch
      %301 = sbr.rel (0) target = $region33
    $region32: #{tpu_custom_call.1} parent=1 // pred_region
      %303 = vsyncadd [#allocation10], 0
      %s305 = sshll.u32 [#allocation9], 4
      %s306 = int_to_ptr.vmem [resolvable:$true] %s305
      %s307 = sshll.u32 %s4, 4
      %s308 = int_to_ptr.hbm [resolvable:$true] %s307
      %310 = dma.vmem_to_hbm [thread:$0]  %s306, 128, %s308, [#allocation10]
    $region33: #{tpu_custom_call.1} parent=1 // pred_fallthru
      _
    // Predicated region
    $region34: #{tpu_custom_call.1} parent=1 // pred_check
      _
    $region35: #{tpu_custom_call.1} parent=1 // pred_check_branch
      %312 = sbr.rel (0) target = $region37
    $region36: #{tpu_custom_call.1} parent=1 // pred_region
      %314 = dma.done [#allocation4], 128
    $region37: #{tpu_custom_call.1} parent=1 // pred_fallthru
      _
    // Predicated region
    $region38: #{tpu_custom_call.1} parent=1 // pred_check
      _
    $region39: #{tpu_custom_call.1} parent=1 // pred_check_branch
      %316 = sbr.rel (0) target = $region41
    $region40: #{tpu_custom_call.1} parent=1 // pred_region
      %318 = dma.done [#allocation10], 128
    $region41: #{tpu_custom_call.1} parent=1 // pred_fallthru
      _
    %319 = vsyncpa [#allocation3], 1
    %320 = vsyncpa [#allocation6], 1
    %321 = vsyncpa [#allocation4], 1
    %322 = vsyncpa [#allocation10], 1

</llo_original>
